<compile_context>
chip_gen: v5e
topology: v5e:2x2
jax: 0.10.0
libtpu: 0.0.40
codegen_flags: <defaults>
</compile_context>

<pallas_src>
import jax
import jax.numpy as jnp
from jax.experimental import pallas as pl
from jax.experimental.pallas import tpu as pltpu


def _round_up(x, m):
    return ((x + m - 1) // m) * m


def gcn_kernel(x_ref, w_ref, d_ref, b_ref, o_ref):
    # x_ref: (TM, K)  w_ref: (K, Hp)  d_ref: (TM, 1)  b_ref: (1, Hp)  o_ref: (TM, Hp)
    y = jnp.dot(x_ref[...], w_ref[...], preferred_element_type=jnp.float32)  # MXU
    # Cheap f32 VPU epilogue: row scale by diag(adj), add bias.
    o_ref[...] = (y * d_ref[...] + b_ref[...]).astype(o_ref.dtype)


def _vmem_capacity_bytes():
    try:
        return int(pltpu.get_tpu_info().vmem_capacity_bytes)
    except Exception:
        return 64 * 2**20  # conservative (v7x per-TensorCore VMEM)


def graph_convolution(x, adj, weight, bias, *, tm_target=1024, use_bf16_matmul=False):
    """x: (N,P,K), adj: (P,P), weight: (K,H), bias: (H,) -> (N,P,H) float32.

    output[n,p,h] = diag(adj)[p] * sum_k x[n,p,k] * weight[k,h] + bias[h]
    """
    N, P, K = x.shape
    Kw, H = weight.shape
    assert Kw == K

    # ---- fold batch into the matmul M dim (no HBM pad copy; ragged block masked) ----
    M = N * P
    # >= 2 grid steps when M permits so the single "parallel" axis can be sharded
    # across both v7x TensorCores; TM stays 8-aligned for sublane layout.
    num_steps = max(2, pl.cdiv(M, tm_target)) if M > 8 else 1
    TM = max(8, min(tm_target, _round_up(pl.cdiv(M, num_steps), 8)))
    grid = (pl.cdiv(M, TM),)

    # Lane padding only when H is already >= 128: for small H, padding to 128
    # multiplies output HBM writes (mem-bound) far more than masked stores cost.
    Hp = _round_up(H, 128) if H >= 128 else H

    x2 = x.reshape(M, K).astype(jnp.float32)
    # diag(adj) per output row (row n*P + p gets diag[p]) -- tiny (M,1) column.
    # The full (P,P) adjacency never enters the kernel.
    diag_rows = jnp.broadcast_to(jnp.diagonal(adj)[None, :], (N, P)).reshape(M, 1)
    diag_rows = diag_rows.astype(jnp.float32)

    w_p = weight.astype(jnp.float32)
    b_p = bias.reshape(1, H).astype(jnp.float32)
    if Hp != H:
        w_p = jnp.pad(w_p, ((0, 0), (0, Hp - H)))
        b_p = jnp.pad(b_p, ((0, 0), (0, Hp - H)))

    if use_bf16_matmul:
        # bf16 MXU inputs are native on v5e, v6e and v7x; accumulation and the
        # scale/bias epilogue stay f32. (Numerics differ from the torch f32 ref.)
        x2 = x2.astype(jnp.bfloat16)
        w_p = w_p.astype(jnp.bfloat16)

    in_itemsize = 2 if use_bf16_matmul else 4

    # ---- explicit, generation-aware VMEM budget ----
    # x / diag / out tiles double-buffered; weight & bias single-buffered
    # (constant index_map -> pl.Buffered(1)).
    vmem_needed = (2 * TM * K * in_itemsize      # x tiles
                   + 2 * TM * Hp * 4             # output tiles
                   + 1 * K * Hp * in_itemsize    # weight (resident, 1 buffer)
                   + 2 * TM * 4                  # diag column tiles
                   + 1 * Hp * 4)                 # bias row (resident, 1 buffer)
    vmem_limit = int(min(0.85 * _vmem_capacity_bytes(),
                         max(32 * 2**20, 2 * vmem_needed)))

    cost = pl.CostEstimate(
        flops=2 * M * K * Hp,
        transcendentals=0,
        bytes_accessed=(M * K * in_itemsize + K * Hp * in_itemsize
                        + M * 4 + Hp * 4 + M * Hp * 4),
    )

    # TODO(synk): when the resident weight (K*Hp*itemsize) approaches ~25-40% of
    # VMEM (trigger earliest on v7x's 64 MiB), switch to an innermost "arbitrary"
    # K grid axis with a (TM,Hp) f32 accumulator scratch + pl.when init/finalize
    # instead of keeping the whole weight resident.

    def call(resident_single_buffered):
        kw = dict(pipeline_mode=pl.Buffered(1)) if resident_single_buffered else {}
        return pl.pallas_call(
            gcn_kernel,
            out_shape=jax.ShapeDtypeStruct((M, Hp), jnp.float32),
            grid_spec=pltpu.PrefetchScalarGridSpec(
                num_scalar_prefetch=0,
                grid=grid,
                in_specs=[
                    pl.BlockSpec((TM, K), lambda i: (i, 0)),        # x row tile (streamed)
                    pl.BlockSpec((K, Hp), lambda i: (0, 0), **kw),  # weight, resident
                    pl.BlockSpec((TM, 1), lambda i: (i, 0)),        # diag(adj) rows (streamed)
                    pl.BlockSpec((1, Hp), lambda i: (0, 0), **kw),  # bias, resident
                ],
                out_specs=pl.BlockSpec((TM, Hp), lambda i: (i, 0)),
            ),
            compiler_params=pltpu.CompilerParams(
                dimension_semantics=("parallel",),
                vmem_limit_bytes=vmem_limit,
            ),
            cost_estimate=cost,
        )(x2, w_p, diag_rows, b_p)

    try:
        out = call(resident_single_buffered=True)
    except Exception:
        # Fallback for JAX versions without BlockSpec pipeline_mode / pl.Buffered.
        out = call(resident_single_buffered=False)

    if Hp != H:
        out = out[:, :H]
    return out.reshape(N, P, H)


if __name__ == "__main__":
    # Small shapes consistent with the module: batch N=2, nodes P=8,
    # in_features K=16, hid_features H=32.
    N, P, K, H = 2, 8, 16, 32

    key = jax.random.PRNGKey(0)
    kx, kadj, kw = jax.random.split(key, 3)

    x = jax.random.normal(kx, (N, P, K), dtype=jnp.float32)
    adj = jax.random.normal(kadj, (P, P), dtype=jnp.float32)

    # Deterministic xavier_uniform-style init for weight, zeros for bias
    # (matches reset_parameters in spirit).
    bound = (6.0 / (K + H)) ** 0.5
    weight = jax.random.uniform(kw, (K, H), dtype=jnp.float32,
                                minval=-bound, maxval=bound)
    bias = jnp.zeros((H,), dtype=jnp.float32)

    out = graph_convolution(x, adj, weight, bias)
    out = jax.block_until_ready(out)

    # Pure-JAX reference (same semantics as the torch einsums).
    ref = jnp.einsum('npk,kh->nph', x, weight)
    ref = jnp.diagonal(adj)[None, :, None] * ref
    ref = ref + bias

    assert out.shape == (N, P, H)
    assert jnp.allclose(out, ref, atol=1e-5, rtol=1e-5), "mismatch vs reference"

    print("KERNEL_OK")
</pallas_src>

<mosaic_0001>
module attributes {stable_mosaic.version = 11 : i64} {
  func.func @gcn_kernel(%arg0: i32, %arg1: memref<8x16xf32, #tpu.memory_space<vmem>>, %arg2: memref<16x32xf32, #tpu.memory_space<vmem>>, %arg3: memref<8x1xf32, #tpu.memory_space<vmem>>, %arg4: memref<1x32xf32, #tpu.memory_space<vmem>>, %arg5: memref<8x32xf32, #tpu.memory_space<vmem>>) attributes {dimension_semantics = [#tpu.dimension_semantics<parallel>], iteration_bounds = array<i64: 2>, scalar_prefetch = 0 : i64, scratch_operands = 0 : i64, tpu.core_type = #tpu.core_type<tc>, window_params = [{transform_indices = @transform_0, window_bounds = array<i64: 8, 16>}, {pipeline_mode = #tpu.pipeline_mode<synchronous>, transform_indices = @transform_1, window_bounds = array<i64: 16, 32>}, {transform_indices = @transform_2, window_bounds = array<i64: 8, 1>}, {pipeline_mode = #tpu.pipeline_mode<synchronous>, transform_indices = @transform_3, window_bounds = array<i64: 1, 32>}, {transform_indices = @transform_4, window_bounds = array<i64: 8, 32>}]} {
    %c0 = arith.constant 0 : index
    %c0_0 = arith.constant 0 : index
    %0 = vector.load %arg1[%c0, %c0_0] : memref<8x16xf32, #tpu.memory_space<vmem>>, vector<8x16xf32>
    %c0_1 = arith.constant 0 : index
    %c0_2 = arith.constant 0 : index
    %1 = vector.load %arg2[%c0_1, %c0_2] : memref<16x32xf32, #tpu.memory_space<vmem>>, vector<16x32xf32>
    %cst = arith.constant dense<0.000000e+00> : vector<8x32xf32>
    %2 = tpu.matmul %0, %1, %cst {dimension_numbers = #tpu.dot_dimension_numbers<[1], [0], [0], [1], [0, 0, 1, 1], [], []>} : vector<8x16xf32>, vector<16x32xf32>, vector<8x32xf32> -> vector<8x32xf32>
    %c0_3 = arith.constant 0 : index
    %c0_4 = arith.constant 0 : index
    %3 = vector.load %arg3[%c0_3, %c0_4] : memref<8x1xf32, #tpu.memory_space<vmem>>, vector<8x1xf32>
    %4 = vector.broadcast %3 : vector<8x1xf32> to vector<8x32xf32>
    %5 = arith.mulf %2, %4 : vector<8x32xf32>
    %c0_5 = arith.constant 0 : index
    %c0_6 = arith.constant 0 : index
    %6 = vector.load %arg4[%c0_5, %c0_6] : memref<1x32xf32, #tpu.memory_space<vmem>>, vector<1x32xf32>
    %7 = vector.broadcast %6 : vector<1x32xf32> to vector<8x32xf32>
    %8 = arith.addf %5, %7 : vector<8x32xf32>
    %c0_7 = arith.constant 0 : index
    %c0_8 = arith.constant 0 : index
    %9 = vector.load %arg5[%c0_7, %c0_8] : memref<8x32xf32, #tpu.memory_space<vmem>>, vector<8x32xf32>
    tpu.vector_store %arg5[%c0_7, %c0_8], %8 {strides = array<i32>} : memref<8x32xf32, #tpu.memory_space<vmem>>, vector<8x32xf32>,
    return
  }
  func.func @transform_0(%arg0: i32) -> (i32, i32) {
    %c0_i32 = arith.constant 0 : i32
    %c0_i32_0 = arith.constant 0 : i32
    return %arg0, %c0_i32 : i32, i32
  }
  func.func @transform_1(%arg0: i32) -> (i32, i32) {
    %c0_i32 = arith.constant 0 : i32
    %c0_i32_0 = arith.constant 0 : i32
    %c0_i32_1 = arith.constant 0 : i32
    return %c0_i32, %c0_i32_0 : i32, i32
  }
  func.func @transform_2(%arg0: i32) -> (i32, i32) {
    %c0_i32 = arith.constant 0 : i32
    %c0_i32_0 = arith.constant 0 : i32
    return %arg0, %c0_i32 : i32, i32
  }
  func.func @transform_3(%arg0: i32) -> (i32, i32) {
    %c0_i32 = arith.constant 0 : i32
    %c0_i32_0 = arith.constant 0 : i32
    %c0_i32_1 = arith.constant 0 : i32
    return %c0_i32, %c0_i32_0 : i32, i32
  }
  func.func @transform_4(%arg0: i32) -> (i32, i32) {
    %c0_i32 = arith.constant 0 : i32
    %c0_i32_0 = arith.constant 0 : i32
    return %arg0, %c0_i32 : i32, i32
  }
}

module attributes {stable_mosaic.version = 11 : i64} {
  func.func @gcn_kernel(%arg0: i32, %arg1: memref<8x16xf32, #tpu.memory_space<vmem>>, %arg2: memref<16x32xf32, #tpu.memory_space<vmem>>, %arg3: memref<8x1xf32, #tpu.memory_space<vmem>>, %arg4: memref<1x32xf32, #tpu.memory_space<vmem>>, %arg5: memref<8x32xf32, #tpu.memory_space<vmem>>) attributes {dimension_semantics = [#tpu.dimension_semantics<parallel>], iteration_bounds = array<i64: 2>, scalar_prefetch = 0 : i64, scratch_operands = 0 : i64, tpu.core_type = #tpu.core_type<tc>, window_params = [{transform_indices = @transform_0, window_bounds = array<i64: 8, 16>}, {pipeline_mode = #tpu.pipeline_mode<synchronous>, transform_indices = @transform_1, window_bounds = array<i64: 16, 32>}, {transform_indices = @transform_2, window_bounds = array<i64: 8, 1>}, {pipeline_mode = #tpu.pipeline_mode<synchronous>, transform_indices = @transform_3, window_bounds = array<i64: 1, 32>}, {transform_indices = @transform_4, window_bounds = array<i64: 8, 32>}]} {
    %c0 = arith.constant 0 : index
    %c0_0 = arith.constant 0 : index
    %0 = vector.load %arg1[%c0, %c0_0] : memref<8x16xf32, #tpu.memory_space<vmem>>, vector<8x16xf32>
    %c0_1 = arith.constant 0 : index
    %c0_2 = arith.constant 0 : index
    %1 = vector.load %arg2[%c0_1, %c0_2] : memref<16x32xf32, #tpu.memory_space<vmem>>, vector<16x32xf32>
    %cst = arith.constant dense<0.000000e+00> : vector<8x32xf32>
    %2 = tpu.matmul %0, %1, %cst {dimension_numbers = #tpu.dot_dimension_numbers<[1], [0], [0], [1], [0, 0, 1, 1], [], []>} : vector<8x16xf32>, vector<16x32xf32>, vector<8x32xf32> -> vector<8x32xf32>
    %c0_3 = arith.constant 0 : index
    %c0_4 = arith.constant 0 : index
    %3 = vector.load %arg3[%c0_3, %c0_4] : memref<8x1xf32, #tpu.memory_space<vmem>>, vector<8x1xf32>
    %4 = vector.broadcast %3 : vector<8x1xf32> to vector<8x32xf32>
    %5 = arith.mulf %2, %4 : vector<8x32xf32>
    %c0_5 = arith.constant 0 : index
    %c0_6 = arith.constant 0 : index
    %6 = vector.load %arg4[%c0_5, %c0_6] : memref<1x32xf32, #tpu.memory_space<vmem>>, vector<1x32xf32>
    %7 = vector.broadcast %6 : vector<1x32xf32> to vector<8x32xf32>
    %8 = arith.addf %5, %7 : vector<8x32xf32>
    %c0_7 = arith.constant 0 : index
    %c0_8 = arith.constant 0 : index
    %9 = vector.load %arg5[%c0_7, %c0_8] : memref<8x32xf32, #tpu.memory_space<vmem>>, vector<8x32xf32>
    tpu.vector_store %arg5[%c0_7, %c0_8], %8 {strides = array<i32>} : memref<8x32xf32, #tpu.memory_space<vmem>>, vector<8x32xf32>,
    return
  }
  func.func @transform_0(%arg0: i32) -> (i32, i32) {
    %c0_i32 = arith.constant 0 : i32
    %c0_i32_0 = arith.constant 0 : i32
    return %arg0, %c0_i32 : i32, i32
  }
  func.func @transform_1(%arg0: i32) -> (i32, i32) {
    %c0_i32 = arith.constant 0 : i32
    %c0_i32_0 = arith.constant 0 : i32
    %c0_i32_1 = arith.constant 0 : i32
    return %c0_i32, %c0_i32_0 : i32, i32
  }
  func.func @transform_2(%arg0: i32) -> (i32, i32) {
    %c0_i32 = arith.constant 0 : i32
    %c0_i32_0 = arith.constant 0 : i32
    return %arg0, %c0_i32 : i32, i32
  }
  func.func @transform_3(%arg0: i32) -> (i32, i32) {
    %c0_i32 = arith.constant 0 : i32
    %c0_i32_0 = arith.constant 0 : i32
    %c0_i32_1 = arith.constant 0 : i32
    return %c0_i32, %c0_i32_0 : i32, i32
  }
  func.func @transform_4(%arg0: i32) -> (i32, i32) {
    %c0_i32 = arith.constant 0 : i32
    %c0_i32_0 = arith.constant 0 : i32
    return %arg0, %c0_i32 : i32, i32
  }
}

</mosaic_0001>

<llo_original>
// kernel: tpu_custom_call.1
$region0: #{tpu_custom_call.1}
  #allocation0 [shape = 'u32[]', space=smem, size = 0x4, offset = 0x4, fixed_abs, tag = 'smem constant byte address 0x4 - core index']
  #allocation1 [shape = 'u32[72,128]{1,0:T(1,128)}', space=vmem, size = 0x9000, scoped, tag = 'internal scratch']
  %s0 = inlined_call_operand.vmem [shape: f32[16,16], index: 0, kind: input, shape index: {}]
  %s1 = inlined_call_operand.hbm [shape: f32[16,32], index: 1, kind: input, shape index: {}]
  %s2 = inlined_call_operand.vmem [shape: f32[16,1], index: 2, kind: input, shape index: {}]
  %s3 = inlined_call_operand.vmem [shape: f32[1,32], index: 3, kind: input, shape index: {}]
  %s4 = inlined_call_operand.hbm [shape: f32[16,32], index: 4, kind: output, shape index: {}]
  %s5 = sld [smem:[#allocation0]]
  $region53: #{tpu_custom_call.1} parent=0
    _
  %s7 = ssub.s32 1, %s5
  %s8 = scalar_select 0, %s7, %s5
  $region1: #{tpu_custom_call.1} parent=0
    #allocation2 [shape = 'u8[8192]{0}', space=vmem, size = 0x2000, scoped, tag = 'input window, operand 1, single buffered']
    #allocation3 [shape = 's32[2]{0}', space=sflag, size = 0x8, scoped, tag = 'scoped memory for tpu_custom_call.1']
    #allocation4 [shape = 's32[2]{0}', space=sflag, size = 0x8, scoped, tag = 'scoped memory for tpu_custom_call.1']
    #allocation5 [shape = 'u8[8192]{0}', space=vmem, size = 0x2000, scoped, tag = 'output window, operand 0']
    %9 = vsyncpa [#allocation3], 0
    %10 = vsyncpa [#allocation4], 0
    %s11 = scalar_lea.sflag [#allocation4], 1
    %12 = vsyncpa %s11, 0
    loop: start=0, step=1, limit=4
    $region2: #{tpu_custom_call.1} parent=1 // loop_pre_header
      _
    $region3: #{tpu_custom_call.1} parent=1 // loop_header
      %s14 = sphi 0, %s18
      %p15 = scmp.ge.s32.totalorder %s14, 4
      %s24 = sphi 0, %s26
      %s27 = sphi 0, %s24
      %s28 = sphi 0, %s27
      %s44 = sphi 0, %s28
      %s48 = sphi 0, %s48
      %s50 = sphi 0, %s48
      %s51 = sphi 0, %s50
      %s65 = sphi 0, %s51
      %s71 = sphi 0, %s73
      %s74 = sphi 0, %s71
      %s75 = sphi 0, %s74
      %s91 = sphi 0, %s75
      %s95 = sphi 0, %s95
      %s97 = sphi 0, %s95
      %s98 = sphi 0, %s97
      %s112 = sphi 0, %s98
      %s118 = sphi 0, %s120
      %s121 = sphi 0, %s118
      %s122 = sphi 0, %s121
      %s138 = sphi 0, %s122
    $region4: #{tpu_custom_call.1} parent=1 // loop_header_branch
      %17 = sbr.rel (%p15) target = $region8
    $region5: #{tpu_custom_call.1} parent=1 // loop_body
      %s19 = ssub.s32 %s14, 1
      %s20 = ssub.s32 %s14, 2
      %s21 = sadd.s32 %s14, 1
      %s22 = ssub.s32 %s14, %s21
      %p23 = scmp.eq.s32.totalorder %s22, 0
      %s25 = sadd.s32 %s24, 1
      %s26 = scalar_select %p23, %s24, %s25
      %p29 = pneg %p23
      %p30 = scmp.eq.s32.totalorder %s14, 1
      %p31 = por %p29, %p30
      %p32 = scmp.ne.s32.totalorder %s24, %s27
      %p33 = scmp.eq.s32.totalorder %s14, 0
      %p34 = por %p32, %p33
      %p35 = scmp.ne.s32.totalorder %s24, %s27
      %p36 = scmp.eq.s32.totalorder %s19, 1
      %p37 = por %p35, %p36
      %p38 = scmp.ne.s32.totalorder %s27, %s28
      %p39 = scmp.eq.s32.totalorder %s19, 0
      %p40 = por %p38, %p39
      %p41 = scmp.ne.s32.totalorder %s27, %s28
      %p42 = scmp.eq.s32.totalorder %s20, 1
      %p43 = por %p41, %p42
      %p45 = scmp.ne.s32.totalorder %s28, %s44
      %p46 = scmp.eq.s32.totalorder %s20, 0
      %p47 = por %p45, %p46
      %s49 = sadd.s32 %s48, 1
      %p52 = scmp.eq.s32.totalorder %s14, 1
      %p53 = scmp.ne.s32.totalorder %s48, %s50
      %p54 = scmp.eq.s32.totalorder %s14, 0
      %p55 = por %p53, %p54
      %p56 = scmp.ne.s32.totalorder %s48, %s50
      %p57 = scmp.eq.s32.totalorder %s19, 1
      %p58 = por %p56, %p57
      %p59 = scmp.ne.s32.totalorder %s50, %s51
      %p60 = scmp.eq.s32.totalorder %s19, 0
      %p61 = por %p59, %p60
      %p62 = scmp.ne.s32.totalorder %s50, %s51
      %p63 = scmp.eq.s32.totalorder %s20, 1
      %p64 = por %p62, %p63
      %p66 = scmp.ne.s32.totalorder %s51, %s65
      %p67 = scmp.eq.s32.totalorder %s20, 0
      %p68 = por %p66, %p67
      %s69 = ssub.s32 %s14, %s21
      %p70 = scmp.eq.s32.totalorder %s69, 0
      %s72 = sadd.s32 %s71, 1
      %s73 = scalar_select %p70, %s71, %s72
      %p76 = pneg %p70
      %p77 = scmp.eq.s32.totalorder %s14, 1
      %p78 = por %p76, %p77
      %p79 = scmp.ne.s32.totalorder %s71, %s74
      %p80 = scmp.eq.s32.totalorder %s14, 0
      %p81 = por %p79, %p80
      %p82 = scmp.ne.s32.totalorder %s71, %s74
      %p83 = scmp.eq.s32.totalorder %s19, 1
      %p84 = por %p82, %p83
      %p85 = scmp.ne.s32.totalorder %s74, %s75
      %p86 = scmp.eq.s32.totalorder %s19, 0
      %p87 = por %p85, %p86
      %p88 = scmp.ne.s32.totalorder %s74, %s75
      %p89 = scmp.eq.s32.totalorder %s20, 1
      %p90 = por %p88, %p89
      %p92 = scmp.ne.s32.totalorder %s75, %s91
      %p93 = scmp.eq.s32.totalorder %s20, 0
      %p94 = por %p92, %p93
      %s96 = sadd.s32 %s95, 1
      %p99 = scmp.eq.s32.totalorder %s14, 1
      %p100 = scmp.ne.s32.totalorder %s95, %s97
      %p101 = scmp.eq.s32.totalorder %s14, 0
      %p102 = por %p100, %p101
      %p103 = scmp.ne.s32.totalorder %s95, %s97
      %p104 = scmp.eq.s32.totalorder %s19, 1
      %p105 = por %p103, %p104
      %p106 = scmp.ne.s32.totalorder %s97, %s98
      %p107 = scmp.eq.s32.totalorder %s19, 0
      %p108 = por %p106, %p107
      %p109 = scmp.ne.s32.totalorder %s97, %s98
      %p110 = scmp.eq.s32.totalorder %s20, 1
      %p111 = por %p109, %p110
      %p113 = scmp.ne.s32.totalorder %s98, %s112
      %p114 = scmp.eq.s32.totalorder %s20, 0
      %p115 = por %p113, %p114
      %s116 = ssub.s32 %s14, %s21
      %p117 = scmp.eq.s32.totalorder %s116, 0
      %s119 = sadd.s32 %s118, 1
      %s120 = scalar_select %p117, %s118, %s119
      %p123 = pneg %p117
      %p124 = scmp.eq.s32.totalorder %s14, 1
      %p125 = por %p123, %p124
      %p126 = scmp.ne.s32.totalorder %s118, %s121
      %p127 = scmp.eq.s32.totalorder %s14, 0
      %p128 = por %p126, %p127
      %p129 = scmp.ne.s32.totalorder %s118, %s121
      %p130 = scmp.eq.s32.totalorder %s19, 1
      %p131 = por %p129, %p130
      %p132 = scmp.ne.s32.totalorder %s121, %s122
      %p133 = scmp.eq.s32.totalorder %s19, 0
      %p134 = por %p132, %p133
      %p135 = scmp.ne.s32.totalorder %s121, %s122
      %p136 = scmp.eq.s32.totalorder %s20, 1
      %p137 = por %p135, %p136
      %p139 = scmp.ne.s32.totalorder %s122, %s138
      %p140 = scmp.eq.s32.totalorder %s20, 0
      %p141 = por %p139, %p140
      %p142 = scmp.le.s32.totalorder 1, %s14
      %p143 = scmp.lt.s32.totalorder %s14, 3
      %p144 = pnand %p142, %p143
      %p145 = pneg %p144
      // Predicated region
      $region9: #{tpu_custom_call.1} parent=5 // pred_check
        _
      $region10: #{tpu_custom_call.1} parent=5 // pred_check_branch
        %147 = sbr.rel (%p144) target = $region12
      $region11: #{tpu_custom_call.1} parent=5 // pred_region
        %s148 = ssub.s32 %s14, 1
        // Predicated region
        $region13: #{tpu_custom_call.1} parent=11 // pred_check
          %p149 = pneg %p61
        $region14: #{tpu_custom_call.1} parent=11 // pred_check_branch
          %151 = sbr.rel (%p149) target = $region16
        $region15: #{tpu_custom_call.1} parent=11 // pred_region
          %153 = vsyncadd [#allocation3], 0
          %s154 = sshll.u32 %s1, 4
          %s155 = int_to_ptr.hbm [resolvable:$true] %s154
          %s156 = sshll.u32 [#allocation2], 4
          %s157 = int_to_ptr.vmem [resolvable:$true] %s156
          %162 = dma.hbm_to_vmem [thread:$0]  %s155, 256, %s157, [#allocation3], 128, 128, 8
        $region16: #{tpu_custom_call.1} parent=11 // pred_fallthru
          _
        // Predicated region
        $region17: #{tpu_custom_call.1} parent=11 // pred_check
          %p163 = pneg %p108
        $region18: #{tpu_custom_call.1} parent=11 // pred_check_branch
          %165 = sbr.rel (%p163) target = $region20
        $region19: #{tpu_custom_call.1} parent=11 // pred_region
          _
        $region20: #{tpu_custom_call.1} parent=11 // pred_fallthru
          _
      $region12: #{tpu_custom_call.1} parent=5 // pred_fallthru
        _
      %p166 = scmp.lt.s32.totalorder %s14, 2
      // Predicated region
      $region21: #{tpu_custom_call.1} parent=5 // pred_check
        %p167 = pneg %p166
      $region22: #{tpu_custom_call.1} parent=5 // pred_check_branch
        %169 = sbr.rel (%p167) target = $region24
      $region23: #{tpu_custom_call.1} parent=5 // pred_region
        // Predicated region
        $region25: #{tpu_custom_call.1} parent=23 // pred_check
          %p170 = pneg %p34
        $region26: #{tpu_custom_call.1} parent=23 // pred_check_branch
          %172 = sbr.rel (%p170) target = $region28
        $region27: #{tpu_custom_call.1} parent=23 // pred_region
          %p173 = scmp.lt.s32.totalorder %s14, 1
          %s174 = scalar_select %p173, %s14, 1
          %s175 = smul.addr %s174, 8
          %s176 = scalar_lea.vmem %s0, %s175
        $region28: #{tpu_custom_call.1} parent=23 // pred_fallthru
          _
        // Predicated region
        $region29: #{tpu_custom_call.1} parent=23 // pred_check
          %p177 = pneg %p81
        $region30: #{tpu_custom_call.1} parent=23 // pred_check_branch
          %179 = sbr.rel (%p177) target = $region32
        $region31: #{tpu_custom_call.1} parent=23 // pred_region
          %p180 = scmp.lt.s32.totalorder %s14, 1
          %s181 = scalar_select %p180, %s14, 1
          %s182 = smul.addr %s181, 8
          %s183 = scalar_lea.vmem %s2, %s182
        $region32: #{tpu_custom_call.1} parent=23 // pred_fallthru
          _
      $region24: #{tpu_custom_call.1} parent=5 // pred_fallthru
        _
      %p184 = scmp.le.s32.totalorder 1, %s14
      %p185 = scmp.lt.s32.totalorder %s14, 3
      %p186 = pnand %p184, %p185
      %p187 = pneg %p186
      // Predicated region
      $region33: #{tpu_custom_call.1} parent=5 // pred_check
        _
      $region34: #{tpu_custom_call.1} parent=5 // pred_check_branch
        %189 = sbr.rel (%p186) target = $region36
      $region35: #{tpu_custom_call.1} parent=5 // pred_region
        %s190 = ssub.s32 %s14, 1
        // Predicated region
        $region37: #{tpu_custom_call.1} parent=35 // pred_check
          %p191 = pneg %p61
        $region38: #{tpu_custom_call.1} parent=35 // pred_check_branch
          %193 = sbr.rel (%p191) target = $region40
        $region39: #{tpu_custom_call.1} parent=35 // pred_region
          %195 = dma.done [#allocation3], 256
        $region40: #{tpu_custom_call.1} parent=35 // pred_fallthru
          _
        %p196 = scmp.lt.s32.totalorder %s19, 1
        %s197 = scalar_select %p196, %s19, 1
        %s198 = smul.addr %s197, 8
        %s199 = scalar_lea.vmem %s0, %s198
        %p200 = pneg %p40
        %p201 = pneg %p37
        %p202 = pneg %p61
        %p203 = pneg %p58
        %p204 = scmp.lt.s32.totalorder %s19, 1
        %s205 = scalar_select %p204, %s19, 1
        %s206 = smul.addr %s205, 8
        %s207 = scalar_lea.vmem %s2, %s206
        %p208 = pneg %p87
        %p209 = pneg %p84
        %p210 = pneg %p108
        %p211 = pneg %p105
        %p212 = pneg %p134
        %p213 = pneg %p131
        %s214 = sand.u32 %s121, 1
        %s215 = scalar_lea.sflag [#allocation4], %s214
        %s216 = sand.u32 %s121, 1
        %s217 = smul.addr %s216, 8
        %s218 = scalar_lea.vmem [#allocation5], %s217
        %p219 = scmp.lt.s32.totalorder %s19, 1
        %s220 = scalar_select %p219, %s19, 1
        %s221 = smul.addr %s220, 8
        %s222 = scalar_lea.vmem %s0, %s221
        %p223 = scmp.lt.s32.totalorder %s19, 1
        %s224 = scalar_select %p223, %s19, 1
        %s225 = smul.addr %s224, 8
        %s226 = scalar_lea.vmem %s2, %s225
        %v227 = vld [vmem:[%s222] sm:$0xff]
        %v228 = vld [vmem:[#allocation2] sm:$0xff]
        %v229 = vld [vmem:[#allocation2 + $0x8] sm:$0xff]
        %vm230 = vcmask 130048
        %v232 = vsel %vm230, %v227, 0
        %234 = vmatpush.msra.mxu0 0.0
        %235 = vmatpush.msra.mxu0 0.0
        %236 = vmatpush.msra.mxu0 0.0
        %237 = vmatpush.msra.mxu0 0.0
        %238 = vmatpush.msra.mxu0 0.0
        %239 = vmatpush.msra.mxu0 0.0
        %240 = vmatpush.msra.mxu0 0.0
        %241 = vmatpush.msra.mxu0 0.0
        %242 = vmatpush.msra.mxu0 0.0
        %243 = vmatpush.msra.mxu0 0.0
        %244 = vmatpush.msra.mxu0 0.0
        %245 = vmatpush.msra.mxu0 0.0
        %246 = vmatpush.msra.mxu0 0.0
        %247 = vmatpush.msra.mxu0 0.0
        %248 = vmatpush.msra.mxu0 %v229
        %249 = vmatpush.msra.mxu0 %v228
        %250 = vmatmul.f32.gmra.mxu0 %v232
        %v251 = vpop.f32.mrf.mxu0
        %v252 = vadd.f32 0.0, %v251
        %253 = vdwg.mxu0
        %v254 = vld [vmem:[%s226] sm:$0xff]
        %256 = vset.pattern.permute.xlu0 0
        %257 = vperm.xlu0 %256, %v254
        %v258 = vpop.permute.xlu0 %257
        %v260 = vmul.f32 %v252, %v258
        %v261 = vld [vmem:[%s3] sm:$0x1]
        %v263 = vperm.slane %v261, 0
        %v265 = vadd.f32 %v260, %v263
        %vm266 = vcmask 261120
        %267 = vst.msk [vmem:[%s218] sm:$0xff] %vm266, %v265
        %s268 = sand.u32 %s121, 1
        %s269 = scalar_lea.sflag [#allocation4], %s268
        %s270 = sand.u32 %s121, 1
        %s271 = smul.addr %s270, 8
        %s272 = scalar_lea.vmem [#allocation5], %s271
        // Predicated region
        $region41: #{tpu_custom_call.1} parent=35 // pred_check
          %p273 = pneg %p131
        $region42: #{tpu_custom_call.1} parent=35 // pred_check_branch
          %275 = sbr.rel (%p273) target = $region44
        $region43: #{tpu_custom_call.1} parent=35 // pred_region
          %277 = vsyncadd %s269, 0
          %s278 = smul.addr %s19, 8
          %s279 = scalar_lea.hbm %s4, %s278
          %s281 = sshll.u32 %s272, 4
          %s282 = int_to_ptr.vmem [resolvable:$true] %s281
          %s283 = sshll.u32 %s279, 4
          %s284 = int_to_ptr.hbm [resolvable:$true] %s283
          %286 = dma.vmem_to_hbm [thread:$0]  %s282, 128, %s284, %s269
        $region44: #{tpu_custom_call.1} parent=35 // pred_fallthru
          _
      $region36: #{tpu_custom_call.1} parent=5 // pred_fallthru
        _
      %p287 = scmp.le.s32.totalorder 2, %s14
      // Predicated region
      $region45: #{tpu_custom_call.1} parent=5 // pred_check
        %p288 = pneg %p287
      $region46: #{tpu_custom_call.1} parent=5 // pred_check_branch
        %290 = sbr.rel (%p288) target = $region48
      $region47: #{tpu_custom_call.1} parent=5 // pred_region
        %s291 = ssub.s32 %s14, 2
        // Predicated region
        $region49: #{tpu_custom_call.1} parent=47 // pred_check
          %p292 = pneg %p137
        $region50: #{tpu_custom_call.1} parent=47 // pred_check_branch
          %294 = sbr.rel (%p292) target = $region52
        $region51: #{tpu_custom_call.1} parent=47 // pred_region
          %s295 = sand.u32 %s122, 1
          %s296 = scalar_lea.sflag [#allocation4], %s295
          %s297 = sand.u32 %s122, 1
          %s298 = smul.addr %s297, 8
          %s299 = scalar_lea.vmem [#allocation5], %s298
          %301 = dma.done %s296, 128
        $region52: #{tpu_custom_call.1} parent=47 // pred_fallthru
          _
      $region48: #{tpu_custom_call.1} parent=5 // pred_fallthru
        _
    $region6: #{tpu_custom_call.1} parent=1 // loop_footer
      %s18 = sadd.s32 1, %s14
    $region7: #{tpu_custom_call.1} parent=1 // loop_footer_branch
      %13 = sbr.rel target = $region3
    $region8: #{tpu_custom_call.1} parent=1 // loop_exit
      _
    %302 = vsyncpa [#allocation3], 1
    %s303 = scalar_lea.sflag [#allocation3], 1
    %304 = vsyncpa %s303, 1
    %305 = vsyncpa [#allocation4], 1
    %s306 = scalar_lea.sflag [#allocation4], 1
    %307 = vsyncpa %s306, 1

// kernel: tpu_custom_call.1
$region0: #{tpu_custom_call.1}
  #allocation0 [shape = 'u32[]', space=smem, size = 0x4, offset = 0x4, fixed_abs, tag = 'smem constant byte address 0x4 - core index']
  #allocation1 [shape = 'u32[72,128]{1,0:T(1,128)}', space=vmem, size = 0x9000, scoped, tag = 'internal scratch']
  %s0 = inlined_call_operand.vmem [shape: f32[16,16], index: 0, kind: input, shape index: {}]
  %s1 = inlined_call_operand.hbm [shape: f32[16,32], index: 1, kind: input, shape index: {}]
  %s2 = inlined_call_operand.vmem [shape: f32[16,1], index: 2, kind: input, shape index: {}]
  %s3 = inlined_call_operand.vmem [shape: f32[1,32], index: 3, kind: input, shape index: {}]
  %s4 = inlined_call_operand.hbm [shape: f32[16,32], index: 4, kind: output, shape index: {}]
  %s5 = sld [smem:[#allocation0]]
  $region53: #{tpu_custom_call.1} parent=0
    _
  %s7 = ssub.s32 1, %s5
  %s8 = scalar_select 0, %s7, %s5
  $region1: #{tpu_custom_call.1} parent=0
    #allocation2 [shape = 'u8[8192]{0}', space=vmem, size = 0x2000, scoped, tag = 'input window, operand 1, single buffered']
    #allocation3 [shape = 's32[2]{0}', space=sflag, size = 0x8, scoped, tag = 'scoped memory for tpu_custom_call.1']
    #allocation4 [shape = 's32[2]{0}', space=sflag, size = 0x8, scoped, tag = 'scoped memory for tpu_custom_call.1']
    #allocation5 [shape = 'u8[8192]{0}', space=vmem, size = 0x2000, scoped, tag = 'output window, operand 0']
    %9 = vsyncpa [#allocation3], 0
    %10 = vsyncpa [#allocation4], 0
    %s11 = scalar_lea.sflag [#allocation4], 1
    %12 = vsyncpa %s11, 0
    loop: start=0, step=1, limit=4
    $region2: #{tpu_custom_call.1} parent=1 // loop_pre_header
      _
    $region3: #{tpu_custom_call.1} parent=1 // loop_header
      %s14 = sphi 0, %s18
      %p15 = scmp.ge.s32.totalorder %s14, 4
      %s24 = sphi 0, %s26
      %s27 = sphi 0, %s24
      %s28 = sphi 0, %s27
      %s44 = sphi 0, %s28
      %s48 = sphi 0, %s48
      %s50 = sphi 0, %s48
      %s51 = sphi 0, %s50
      %s65 = sphi 0, %s51
      %s71 = sphi 0, %s73
      %s74 = sphi 0, %s71
      %s75 = sphi 0, %s74
      %s91 = sphi 0, %s75
      %s95 = sphi 0, %s95
      %s97 = sphi 0, %s95
      %s98 = sphi 0, %s97
      %s112 = sphi 0, %s98
      %s118 = sphi 0, %s120
      %s121 = sphi 0, %s118
      %s122 = sphi 0, %s121
      %s138 = sphi 0, %s122
    $region4: #{tpu_custom_call.1} parent=1 // loop_header_branch
      %17 = sbr.rel (%p15) target = $region8
    $region5: #{tpu_custom_call.1} parent=1 // loop_body
      %s19 = ssub.s32 %s14, 1
      %s20 = ssub.s32 %s14, 2
      %s21 = sadd.s32 %s14, 1
      %s22 = ssub.s32 %s14, %s21
      %p23 = scmp.eq.s32.totalorder %s22, 0
      %s25 = sadd.s32 %s24, 1
      %s26 = scalar_select %p23, %s24, %s25
      %p29 = pneg %p23
      %p30 = scmp.eq.s32.totalorder %s14, 1
      %p31 = por %p29, %p30
      %p32 = scmp.ne.s32.totalorder %s24, %s27
      %p33 = scmp.eq.s32.totalorder %s14, 0
      %p34 = por %p32, %p33
      %p35 = scmp.ne.s32.totalorder %s24, %s27
      %p36 = scmp.eq.s32.totalorder %s19, 1
      %p37 = por %p35, %p36
      %p38 = scmp.ne.s32.totalorder %s27, %s28
      %p39 = scmp.eq.s32.totalorder %s19, 0
      %p40 = por %p38, %p39
      %p41 = scmp.ne.s32.totalorder %s27, %s28
      %p42 = scmp.eq.s32.totalorder %s20, 1
      %p43 = por %p41, %p42
      %p45 = scmp.ne.s32.totalorder %s28, %s44
      %p46 = scmp.eq.s32.totalorder %s20, 0
      %p47 = por %p45, %p46
      %s49 = sadd.s32 %s48, 1
      %p52 = scmp.eq.s32.totalorder %s14, 1
      %p53 = scmp.ne.s32.totalorder %s48, %s50
      %p54 = scmp.eq.s32.totalorder %s14, 0
      %p55 = por %p53, %p54
      %p56 = scmp.ne.s32.totalorder %s48, %s50
      %p57 = scmp.eq.s32.totalorder %s19, 1
      %p58 = por %p56, %p57
      %p59 = scmp.ne.s32.totalorder %s50, %s51
      %p60 = scmp.eq.s32.totalorder %s19, 0
      %p61 = por %p59, %p60
      %p62 = scmp.ne.s32.totalorder %s50, %s51
      %p63 = scmp.eq.s32.totalorder %s20, 1
      %p64 = por %p62, %p63
      %p66 = scmp.ne.s32.totalorder %s51, %s65
      %p67 = scmp.eq.s32.totalorder %s20, 0
      %p68 = por %p66, %p67
      %s69 = ssub.s32 %s14, %s21
      %p70 = scmp.eq.s32.totalorder %s69, 0
      %s72 = sadd.s32 %s71, 1
      %s73 = scalar_select %p70, %s71, %s72
      %p76 = pneg %p70
      %p77 = scmp.eq.s32.totalorder %s14, 1
      %p78 = por %p76, %p77
      %p79 = scmp.ne.s32.totalorder %s71, %s74
      %p80 = scmp.eq.s32.totalorder %s14, 0
      %p81 = por %p79, %p80
      %p82 = scmp.ne.s32.totalorder %s71, %s74
      %p83 = scmp.eq.s32.totalorder %s19, 1
      %p84 = por %p82, %p83
      %p85 = scmp.ne.s32.totalorder %s74, %s75
      %p86 = scmp.eq.s32.totalorder %s19, 0
      %p87 = por %p85, %p86
      %p88 = scmp.ne.s32.totalorder %s74, %s75
      %p89 = scmp.eq.s32.totalorder %s20, 1
      %p90 = por %p88, %p89
      %p92 = scmp.ne.s32.totalorder %s75, %s91
      %p93 = scmp.eq.s32.totalorder %s20, 0
      %p94 = por %p92, %p93
      %s96 = sadd.s32 %s95, 1
      %p99 = scmp.eq.s32.totalorder %s14, 1
      %p100 = scmp.ne.s32.totalorder %s95, %s97
      %p101 = scmp.eq.s32.totalorder %s14, 0
      %p102 = por %p100, %p101
      %p103 = scmp.ne.s32.totalorder %s95, %s97
      %p104 = scmp.eq.s32.totalorder %s19, 1
      %p105 = por %p103, %p104
      %p106 = scmp.ne.s32.totalorder %s97, %s98
      %p107 = scmp.eq.s32.totalorder %s19, 0
      %p108 = por %p106, %p107
      %p109 = scmp.ne.s32.totalorder %s97, %s98
      %p110 = scmp.eq.s32.totalorder %s20, 1
      %p111 = por %p109, %p110
      %p113 = scmp.ne.s32.totalorder %s98, %s112
      %p114 = scmp.eq.s32.totalorder %s20, 0
      %p115 = por %p113, %p114
      %s116 = ssub.s32 %s14, %s21
      %p117 = scmp.eq.s32.totalorder %s116, 0
      %s119 = sadd.s32 %s118, 1
      %s120 = scalar_select %p117, %s118, %s119
      %p123 = pneg %p117
      %p124 = scmp.eq.s32.totalorder %s14, 1
      %p125 = por %p123, %p124
      %p126 = scmp.ne.s32.totalorder %s118, %s121
      %p127 = scmp.eq.s32.totalorder %s14, 0
      %p128 = por %p126, %p127
      %p129 = scmp.ne.s32.totalorder %s118, %s121
      %p130 = scmp.eq.s32.totalorder %s19, 1
      %p131 = por %p129, %p130
      %p132 = scmp.ne.s32.totalorder %s121, %s122
      %p133 = scmp.eq.s32.totalorder %s19, 0
      %p134 = por %p132, %p133
      %p135 = scmp.ne.s32.totalorder %s121, %s122
      %p136 = scmp.eq.s32.totalorder %s20, 1
      %p137 = por %p135, %p136
      %p139 = scmp.ne.s32.totalorder %s122, %s138
      %p140 = scmp.eq.s32.totalorder %s20, 0
      %p141 = por %p139, %p140
      %p142 = scmp.le.s32.totalorder 1, %s14
      %p143 = scmp.lt.s32.totalorder %s14, 3
      %p144 = pnand %p142, %p143
      %p145 = pneg %p144
      // Predicated region
      $region9: #{tpu_custom_call.1} parent=5 // pred_check
        _
      $region10: #{tpu_custom_call.1} parent=5 // pred_check_branch
        %147 = sbr.rel (%p144) target = $region12
      $region11: #{tpu_custom_call.1} parent=5 // pred_region
        %s148 = ssub.s32 %s14, 1
        // Predicated region
        $region13: #{tpu_custom_call.1} parent=11 // pred_check
          %p149 = pneg %p61
        $region14: #{tpu_custom_call.1} parent=11 // pred_check_branch
          %151 = sbr.rel (%p149) target = $region16
        $region15: #{tpu_custom_call.1} parent=11 // pred_region
          %153 = vsyncadd [#allocation3], 0
          %s154 = sshll.u32 %s1, 4
          %s155 = int_to_ptr.hbm [resolvable:$true] %s154
          %s156 = sshll.u32 [#allocation2], 4
          %s157 = int_to_ptr.vmem [resolvable:$true] %s156
          %162 = dma.hbm_to_vmem [thread:$0]  %s155, 256, %s157, [#allocation3], 128, 128, 8
        $region16: #{tpu_custom_call.1} parent=11 // pred_fallthru
          _
        // Predicated region
        $region17: #{tpu_custom_call.1} parent=11 // pred_check
          %p163 = pneg %p108
        $region18: #{tpu_custom_call.1} parent=11 // pred_check_branch
          %165 = sbr.rel (%p163) target = $region20
        $region19: #{tpu_custom_call.1} parent=11 // pred_region
          _
        $region20: #{tpu_custom_call.1} parent=11 // pred_fallthru
          _
      $region12: #{tpu_custom_call.1} parent=5 // pred_fallthru
        _
      %p166 = scmp.lt.s32.totalorder %s14, 2
      // Predicated region
      $region21: #{tpu_custom_call.1} parent=5 // pred_check
        %p167 = pneg %p166
      $region22: #{tpu_custom_call.1} parent=5 // pred_check_branch
        %169 = sbr.rel (%p167) target = $region24
      $region23: #{tpu_custom_call.1} parent=5 // pred_region
        // Predicated region
        $region25: #{tpu_custom_call.1} parent=23 // pred_check
          %p170 = pneg %p34
        $region26: #{tpu_custom_call.1} parent=23 // pred_check_branch
          %172 = sbr.rel (%p170) target = $region28
        $region27: #{tpu_custom_call.1} parent=23 // pred_region
          %p173 = scmp.lt.s32.totalorder %s14, 1
          %s174 = scalar_select %p173, %s14, 1
          %s175 = smul.addr %s174, 8
          %s176 = scalar_lea.vmem %s0, %s175
        $region28: #{tpu_custom_call.1} parent=23 // pred_fallthru
          _
        // Predicated region
        $region29: #{tpu_custom_call.1} parent=23 // pred_check
          %p177 = pneg %p81
        $region30: #{tpu_custom_call.1} parent=23 // pred_check_branch
          %179 = sbr.rel (%p177) target = $region32
        $region31: #{tpu_custom_call.1} parent=23 // pred_region
          %p180 = scmp.lt.s32.totalorder %s14, 1
          %s181 = scalar_select %p180, %s14, 1
          %s182 = smul.addr %s181, 8
          %s183 = scalar_lea.vmem %s2, %s182
        $region32: #{tpu_custom_call.1} parent=23 // pred_fallthru
          _
      $region24: #{tpu_custom_call.1} parent=5 // pred_fallthru
        _
      %p184 = scmp.le.s32.totalorder 1, %s14
      %p185 = scmp.lt.s32.totalorder %s14, 3
      %p186 = pnand %p184, %p185
      %p187 = pneg %p186
      // Predicated region
      $region33: #{tpu_custom_call.1} parent=5 // pred_check
        _
      $region34: #{tpu_custom_call.1} parent=5 // pred_check_branch
        %189 = sbr.rel (%p186) target = $region36
      $region35: #{tpu_custom_call.1} parent=5 // pred_region
        %s190 = ssub.s32 %s14, 1
        // Predicated region
        $region37: #{tpu_custom_call.1} parent=35 // pred_check
          %p191 = pneg %p61
        $region38: #{tpu_custom_call.1} parent=35 // pred_check_branch
          %193 = sbr.rel (%p191) target = $region40
        $region39: #{tpu_custom_call.1} parent=35 // pred_region
          %195 = dma.done [#allocation3], 256
        $region40: #{tpu_custom_call.1} parent=35 // pred_fallthru
          _
        %p196 = scmp.lt.s32.totalorder %s19, 1
        %s197 = scalar_select %p196, %s19, 1
        %s198 = smul.addr %s197, 8
        %s199 = scalar_lea.vmem %s0, %s198
        %p200 = pneg %p40
        %p201 = pneg %p37
        %p202 = pneg %p61
        %p203 = pneg %p58
        %p204 = scmp.lt.s32.totalorder %s19, 1
        %s205 = scalar_select %p204, %s19, 1
        %s206 = smul.addr %s205, 8
        %s207 = scalar_lea.vmem %s2, %s206
        %p208 = pneg %p87
        %p209 = pneg %p84
        %p210 = pneg %p108
        %p211 = pneg %p105
        %p212 = pneg %p134
        %p213 = pneg %p131
        %s214 = sand.u32 %s121, 1
        %s215 = scalar_lea.sflag [#allocation4], %s214
        %s216 = sand.u32 %s121, 1
        %s217 = smul.addr %s216, 8
        %s218 = scalar_lea.vmem [#allocation5], %s217
        %p219 = scmp.lt.s32.totalorder %s19, 1
        %s220 = scalar_select %p219, %s19, 1
        %s221 = smul.addr %s220, 8
        %s222 = scalar_lea.vmem %s0, %s221
        %p223 = scmp.lt.s32.totalorder %s19, 1
        %s224 = scalar_select %p223, %s19, 1
        %s225 = smul.addr %s224, 8
        %s226 = scalar_lea.vmem %s2, %s225
        %v227 = vld [vmem:[%s222] sm:$0xff]
        %v228 = vld [vmem:[#allocation2] sm:$0xff]
        %v229 = vld [vmem:[#allocation2 + $0x8] sm:$0xff]
        %vm230 = vcmask 130048
        %v232 = vsel %vm230, %v227, 0
        %234 = vmatpush.msra.mxu0 0.0
        %235 = vmatpush.msra.mxu0 0.0
        %236 = vmatpush.msra.mxu0 0.0
        %237 = vmatpush.msra.mxu0 0.0
        %238 = vmatpush.msra.mxu0 0.0
        %239 = vmatpush.msra.mxu0 0.0
        %240 = vmatpush.msra.mxu0 0.0
        %241 = vmatpush.msra.mxu0 0.0
        %242 = vmatpush.msra.mxu0 0.0
        %243 = vmatpush.msra.mxu0 0.0
        %244 = vmatpush.msra.mxu0 0.0
        %245 = vmatpush.msra.mxu0 0.0
        %246 = vmatpush.msra.mxu0 0.0
        %247 = vmatpush.msra.mxu0 0.0
        %248 = vmatpush.msra.mxu0 %v229
        %249 = vmatpush.msra.mxu0 %v228
        %250 = vmatmul.f32.gmra.mxu0 %v232
        %v251 = vpop.f32.mrf.mxu0
        %v252 = vadd.f32 0.0, %v251
        %253 = vdwg.mxu0
        %v254 = vld [vmem:[%s226] sm:$0xff]
        %256 = vset.pattern.permute.xlu0 0
        %257 = vperm.xlu0 %256, %v254
        %v258 = vpop.permute.xlu0 %257
        %v260 = vmul.f32 %v252, %v258
        %v261 = vld [vmem:[%s3] sm:$0x1]
        %v263 = vperm.slane %v261, 0
        %v265 = vadd.f32 %v260, %v263
        %vm266 = vcmask 261120
        %267 = vst.msk [vmem:[%s218] sm:$0xff] %vm266, %v265
        %s268 = sand.u32 %s121, 1
        %s269 = scalar_lea.sflag [#allocation4], %s268
        %s270 = sand.u32 %s121, 1
        %s271 = smul.addr %s270, 8
        %s272 = scalar_lea.vmem [#allocation5], %s271
        // Predicated region
        $region41: #{tpu_custom_call.1} parent=35 // pred_check
          %p273 = pneg %p131
        $region42: #{tpu_custom_call.1} parent=35 // pred_check_branch
          %275 = sbr.rel (%p273) target = $region44
        $region43: #{tpu_custom_call.1} parent=35 // pred_region
          %277 = vsyncadd %s269, 0
          %s278 = smul.addr %s19, 8
          %s279 = scalar_lea.hbm %s4, %s278
          %s281 = sshll.u32 %s272, 4
          %s282 = int_to_ptr.vmem [resolvable:$true] %s281
          %s283 = sshll.u32 %s279, 4
          %s284 = int_to_ptr.hbm [resolvable:$true] %s283
          %286 = dma.vmem_to_hbm [thread:$0]  %s282, 128, %s284, %s269
        $region44: #{tpu_custom_call.1} parent=35 // pred_fallthru
          _
      $region36: #{tpu_custom_call.1} parent=5 // pred_fallthru
        _
      %p287 = scmp.le.s32.totalorder 2, %s14
      // Predicated region
      $region45: #{tpu_custom_call.1} parent=5 // pred_check
        %p288 = pneg %p287
      $region46: #{tpu_custom_call.1} parent=5 // pred_check_branch
        %290 = sbr.rel (%p288) target = $region48
      $region47: #{tpu_custom_call.1} parent=5 // pred_region
        %s291 = ssub.s32 %s14, 2
        // Predicated region
        $region49: #{tpu_custom_call.1} parent=47 // pred_check
          %p292 = pneg %p137
        $region50: #{tpu_custom_call.1} parent=47 // pred_check_branch
          %294 = sbr.rel (%p292) target = $region52
        $region51: #{tpu_custom_call.1} parent=47 // pred_region
          %s295 = sand.u32 %s122, 1
          %s296 = scalar_lea.sflag [#allocation4], %s295
          %s297 = sand.u32 %s122, 1
          %s298 = smul.addr %s297, 8
          %s299 = scalar_lea.vmem [#allocation5], %s298
          %301 = dma.done %s296, 128
        $region52: #{tpu_custom_call.1} parent=47 // pred_fallthru
          _
      $region48: #{tpu_custom_call.1} parent=5 // pred_fallthru
        _
    $region6: #{tpu_custom_call.1} parent=1 // loop_footer
      %s18 = sadd.s32 1, %s14
    $region7: #{tpu_custom_call.1} parent=1 // loop_footer_branch
      %13 = sbr.rel target = $region3
    $region8: #{tpu_custom_call.1} parent=1 // loop_exit
      _
    %302 = vsyncpa [#allocation3], 1
    %s303 = scalar_lea.sflag [#allocation3], 1
    %304 = vsyncpa %s303, 1
    %305 = vsyncpa [#allocation4], 1
    %s306 = scalar_lea.sflag [#allocation4], 1
    %307 = vsyncpa %s306, 1

</llo_original>
